<compile_context>
chip_gen: v6e
topology: v6e:2x2x1
jax: 0.10.0
libtpu: 0.0.40
codegen_flags: <defaults>
</compile_context>

<pallas_src>
import functools

import jax
import jax.numpy as jnp
import numpy as np
from jax.experimental import pallas as pl
from jax.experimental.pallas import tpu as pltpu


# ----------------------------- Pallas kernels ------------------------------

def _patch_embed_kernel(p_ref, w_ref, b_ref, o_ref):
    # out_tile = patches_tile @ W + bias     (MXU matmul, f32 accumulation)
    acc = jnp.dot(p_ref[...], w_ref[...], preferred_element_type=jnp.float32)
    o_ref[...] = (acc + b_ref[...]).astype(o_ref.dtype)


def _patch_embed_norm_kernel(p_ref, w_ref, b_ref, g_ref, beta_ref, o_ref, *,
                             inv_e, eps):
    # out_tile = LayerNorm(patches_tile @ W + bias) * gamma + beta
    acc = jnp.dot(p_ref[...], w_ref[...], preferred_element_type=jnp.float32)
    acc = acc + b_ref[...]
    # Two-pass (centered) stats over the embed dim E: XLU reduces, negligible
    # next to the DMA; numerically safer than E[x^2]-mean^2.
    mean = jnp.sum(acc, axis=-1, keepdims=True) * inv_e
    diff = acc - mean
    var = jnp.sum(diff * diff, axis=-1, keepdims=True) * inv_e
    inv = jax.lax.rsqrt(var + eps)                      # EUP; off the VPU path
    o_ref[...] = (diff * inv * g_ref[...] + beta_ref[...]).astype(o_ref.dtype)


# ------------------------------- wrapper ------------------------------------

def _round_up(x, m):
    return (x + m - 1) // m * m


def patch_embed_2d(x, weight, bias, patch_size, gamma=None, beta=None, *,
                   compute_dtype=jnp.bfloat16, tile_m=4096, eps=1e-5):
    """x: [B, C, H, W] (NCHW). weight: [E, C, p, p]. bias: [E].
    Returns [B, H//p, W//p, E]  ==  proj(x).permute(0, 2, 3, 1) (+ optional LN).
    """
    B, C, H, W = x.shape
    E = weight.shape[0]
    p = patch_size
    Ho, Wo = H // p, W // p
    M, K = B * Ho * Wo, C * p * p

    # Patch extraction (pure layout glue).  Cast to bf16 first so the
    # materialized slab is half-width; allow_input_fusion below lets XLA fuse
    # this chain into the pallas input when the wrapper is jitted.
    # TODO(synk): a manual-DMA variant (grid over (B, Ho), memory_space=pl.ANY
    # on x, in-kernel relayout) would remove this extra HBM pass entirely.
    patches = x.astype(compute_dtype).reshape(B, C, Ho, p, Wo, p)
    patches = patches.transpose(0, 2, 4, 1, 3, 5).reshape(M, K)

    # Row-tile size: multiple of the sublane packing for the compute dtype.
    sublane = 16 if compute_dtype == jnp.bfloat16 else 8
    TM = min(tile_m, _round_up(M, sublane))
    M_pad = _round_up(M, TM)
    if M_pad != M:
        patches = jnp.pad(patches, ((0, M_pad - M), (0, 0)))

    # Conv2d weight [E, C, p, p] -> [K, E] with K flattened as (c, kh, kw).
    w_k = weight.reshape(E, K).T.astype(compute_dtype)
    b_k = bias.astype(jnp.float32).reshape(1, E)

    row_spec = pl.BlockSpec((TM, K), lambda i: (i, 0))               # streamed
    resident = lambda shape: pl.BlockSpec(shape, lambda i: (0, 0))   # DMA'd once

    if gamma is None:
        kernel = _patch_embed_kernel
        args = (patches, w_k, b_k)
        in_specs = [row_spec, resident((K, E)), resident((1, E))]
    else:
        g_k = gamma.astype(jnp.float32).reshape(1, E)
        beta_k = beta.astype(jnp.float32).reshape(1, E)
        kernel = functools.partial(_patch_embed_norm_kernel,
                                   inv_e=1.0 / E, eps=eps)
        args = (patches, w_k, b_k, g_k, beta_k)
        in_specs = [row_spec, resident((K, E)), resident((1, E)),
                    resident((1, E)), resident((1, E))]

    out = pl.pallas_call(
        kernel,
        grid=(M_pad // TM,),
        in_specs=in_specs,
        out_specs=pl.BlockSpec((TM, E), lambda i: (i, 0)),
        out_shape=jax.ShapeDtypeStruct((M_pad, E), x.dtype),
        compiler_params=pltpu.CompilerParams(
            dimension_semantics=("parallel",),          # megacore on multi-TC
            vmem_limit_bytes=32 * 1024 * 1024,          # safe on v5e/v6e/v7x
            allow_input_fusion=[True] + [False] * (len(args) - 1),
        ),
    )(*args)

    if M_pad != M:
        out = out[:M]
    return out.reshape(B, Ho, Wo, E)


# ------------------------------ reference -----------------------------------

def _reference(x, weight, bias, patch_size, gamma=None, beta=None,
               compute_dtype=jnp.bfloat16, eps=1e-5):
    # Match the kernel's bf16 input rounding; accumulate in true f32.
    xq = x.astype(compute_dtype).astype(jnp.float32)
    wq = weight.astype(compute_dtype).astype(jnp.float32)
    y = jax.lax.conv_general_dilated(
        xq, wq, window_strides=(patch_size, patch_size), padding="VALID",
        dimension_numbers=("NCHW", "OIHW", "NCHW"),
        precision=jax.lax.Precision.HIGHEST)
    y = y + bias.astype(jnp.float32).reshape(1, -1, 1, 1)
    y = jnp.transpose(y, (0, 2, 3, 1))                    # NHWC
    if gamma is not None:
        mean = jnp.mean(y, axis=-1, keepdims=True)
        var = jnp.mean(jnp.square(y - mean), axis=-1, keepdims=True)
        y = (y - mean) * jax.lax.rsqrt(var + eps) * gamma + beta
    return y


# -------------------------------- main ---------------------------------------

if __name__ == "__main__":
    B, C, H, W = 2, 4, 16, 16
    patch_size = 4
    embed_dim = 32

    key = jax.random.PRNGKey(0)
    kx, kw, kb = jax.random.split(key, 3)

    x = jax.random.normal(kx, (B, C, H, W), dtype=jnp.float32)
    weight = jax.random.normal(kw, (embed_dim, C, patch_size, patch_size),
                               dtype=jnp.float32) * 0.05
    bias = jax.random.normal(kb, (embed_dim,), dtype=jnp.float32) * 0.05
    gamma = jnp.linspace(0.5, 1.5, embed_dim, dtype=jnp.float32)
    beta = jnp.linspace(-0.1, 0.1, embed_dim, dtype=jnp.float32)

    embed = jax.jit(functools.partial(patch_embed_2d, patch_size=patch_size))

    # Default module config: norm_layer=None
    out_plain = jax.block_until_ready(embed(x, weight, bias))
    ref_plain = _reference(x, weight, bias, patch_size)
    np.testing.assert_allclose(np.asarray(out_plain), np.asarray(ref_plain),
                               rtol=1e-4, atol=1e-4)

    # Optional norm_layer=LayerNorm path
    out_norm = jax.block_until_ready(embed(x, weight, bias, gamma=gamma,
                                           beta=beta))
    ref_norm = _reference(x, weight, bias, patch_size, gamma, beta)
    np.testing.assert_allclose(np.asarray(out_norm), np.asarray(ref_norm),
                               rtol=5e-4, atol=5e-4)

    assert out_plain.shape == (B, H // patch_size, W // patch_size, embed_dim)
    assert out_norm.shape == (B, H // patch_size, W // patch_size, embed_dim)
    print("KERNEL_OK")
</pallas_src>

<mosaic_0001>
module attributes {stable_mosaic.version = 11 : i64} {
  func.func @_patch_embed_kernel(%arg0: i32, %arg1: memref<32x64xbf16, #tpu.memory_space<vmem>>, %arg2: memref<64x32xbf16, #tpu.memory_space<vmem>>, %arg3: memref<1x32xf32, #tpu.memory_space<vmem>>, %arg4: memref<32x32xf32, #tpu.memory_space<vmem>>) attributes {dimension_semantics = [#tpu.dimension_semantics<parallel>], iteration_bounds = array<i64: 1>, scalar_prefetch = 0 : i64, scratch_operands = 0 : i64, tpu.core_type = #tpu.core_type<tc>, window_params = [{transform_indices = @transform_0, window_bounds = array<i64: 32, 64>}, {pipeline_mode = #tpu.pipeline_mode<synchronous>, transform_indices = @transform_1, window_bounds = array<i64: 64, 32>}, {pipeline_mode = #tpu.pipeline_mode<synchronous>, transform_indices = @transform_2, window_bounds = array<i64: 1, 32>}, {transform_indices = @transform_3, window_bounds = array<i64: 32, 32>}]} {
    %c0 = arith.constant 0 : index
    %c0_0 = arith.constant 0 : index
    %0 = vector.load %arg1[%c0, %c0_0] : memref<32x64xbf16, #tpu.memory_space<vmem>>, vector<32x64xbf16>
    %c0_1 = arith.constant 0 : index
    %c0_2 = arith.constant 0 : index
    %1 = vector.load %arg2[%c0_1, %c0_2] : memref<64x32xbf16, #tpu.memory_space<vmem>>, vector<64x32xbf16>
    %cst = arith.constant dense<0.000000e+00> : vector<32x32xf32>
    %2 = tpu.matmul %0, %1, %cst {dimension_numbers = #tpu.dot_dimension_numbers<[1], [0], [0], [1], [0, 0, 1, 1], [], []>} : vector<32x64xbf16>, vector<64x32xbf16>, vector<32x32xf32> -> vector<32x32xf32>
    %c0_3 = arith.constant 0 : index
    %c0_4 = arith.constant 0 : index
    %3 = vector.load %arg3[%c0_3, %c0_4] : memref<1x32xf32, #tpu.memory_space<vmem>>, vector<1x32xf32>
    %4 = vector.broadcast %3 : vector<1x32xf32> to vector<32x32xf32>
    %5 = arith.addf %2, %4 : vector<32x32xf32>
    %c0_5 = arith.constant 0 : index
    %c0_6 = arith.constant 0 : index
    %6 = vector.load %arg4[%c0_5, %c0_6] : memref<32x32xf32, #tpu.memory_space<vmem>>, vector<32x32xf32>
    tpu.vector_store %arg4[%c0_5, %c0_6], %5 {strides = array<i32>} : memref<32x32xf32, #tpu.memory_space<vmem>>, vector<32x32xf32>,
    return
  }
  func.func @transform_0(%arg0: i32) -> (i32, i32) {
    %c0_i32 = arith.constant 0 : i32
    %c0_i32_0 = arith.constant 0 : i32
    return %arg0, %c0_i32 : i32, i32
  }
  func.func @transform_1(%arg0: i32) -> (i32, i32) {
    %c0_i32 = arith.constant 0 : i32
    %c0_i32_0 = arith.constant 0 : i32
    %c0_i32_1 = arith.constant 0 : i32
    return %c0_i32, %c0_i32_0 : i32, i32
  }
  func.func @transform_2(%arg0: i32) -> (i32, i32) {
    %c0_i32 = arith.constant 0 : i32
    %c0_i32_0 = arith.constant 0 : i32
    %c0_i32_1 = arith.constant 0 : i32
    return %c0_i32, %c0_i32_0 : i32, i32
  }
  func.func @transform_3(%arg0: i32) -> (i32, i32) {
    %c0_i32 = arith.constant 0 : i32
    %c0_i32_0 = arith.constant 0 : i32
    return %arg0, %c0_i32 : i32, i32
  }
}

</mosaic_0001>

<llo_original>
// kernel: patch_embed_2d.1
$region0: #{patch_embed_2d.1}
  #allocation0 [shape = 'u32[]', space=smem, size = 0x4, offset = 0x4, fixed_abs, tag = 'smem constant byte address 0x4 - core index']
  #allocation1 [shape = 'u32[144,128]{1,0:T(1,128)}', space=vmem, size = 0x12000, scoped, tag = 'internal scratch']
  %s0 = inlined_call_operand.vmem [shape: bf16[32,64], index: 0, kind: input, shape index: {}]
  %s1 = inlined_call_operand.vmem [shape: bf16[64,32], index: 1, kind: input, shape index: {}]
  %s2 = inlined_call_operand.vmem [shape: f32[1,32], index: 2, kind: input, shape index: {}]
  %s3 = inlined_call_operand.hbm [shape: f32[32,32], index: 3, kind: output, shape index: {}]
  %s4 = sld [smem:[#allocation0]]
  $region22: #{patch_embed_2d.1} parent=0
    _
  %s6 = ssub.s32 1, %s4
  %s7 = scalar_select 0, %s6, %s4
  $region1: #{patch_embed_2d.1} parent=0
    #allocation2 [shape = 'u8[16384]{0}', space=vmem, size = 0x4000, scoped, tag = 'output window, operand 0, single buffered']
    #allocation3 [shape = 's32[1]{0}', space=sflag, size = 0x4, scoped, tag = 'scoped memory for patch_embed_2d.1']
    %8 = vsyncpa [#allocation3], 0
    // Predicated region
    $region2: #{patch_embed_2d.1} parent=1 // pred_check
      _
    $region3: #{patch_embed_2d.1} parent=1 // pred_check_branch
      %10 = sbr.rel (0) target = $region5
    $region4: #{patch_embed_2d.1} parent=1 // pred_region
      _
    $region5: #{patch_embed_2d.1} parent=1 // pred_fallthru
      _
    // Predicated region
    $region6: #{patch_embed_2d.1} parent=1 // pred_check
      _
    $region7: #{patch_embed_2d.1} parent=1 // pred_check_branch
      %12 = sbr.rel (0) target = $region9
    $region8: #{patch_embed_2d.1} parent=1 // pred_region
      _
    $region9: #{patch_embed_2d.1} parent=1 // pred_fallthru
      _
    // Predicated region
    $region10: #{patch_embed_2d.1} parent=1 // pred_check
      _
    $region11: #{patch_embed_2d.1} parent=1 // pred_check_branch
      %14 = sbr.rel (0) target = $region13
    $region12: #{patch_embed_2d.1} parent=1 // pred_region
      _
    $region13: #{patch_embed_2d.1} parent=1 // pred_fallthru
      _
    %v16 = vld [vmem:[%s0] sm:$0xf]
    %v17 = vld [vmem:[%s0 + $0x4] sm:$0xf]
    %v18 = vld [vmem:[%s0 + $0x8] sm:$0xf]
    %v19 = vld [vmem:[%s0 + $0xc] sm:$0xf]
    %v20 = vld [vmem:[%s1] sm:$0xf]
    %v21 = vld [vmem:[%s1 + $0x4] sm:$0xf]
    %v22 = vld [vmem:[%s1 + $0x8] sm:$0xf]
    %v23 = vld [vmem:[%s1 + $0xc] sm:$0xf]
    %v24 = vld [vmem:[%s1 + $0x10] sm:$0xf]
    %v25 = vld [vmem:[%s1 + $0x14] sm:$0xf]
    %v26 = vld [vmem:[%s1 + $0x18] sm:$0xf]
    %v27 = vld [vmem:[%s1 + $0x1c] sm:$0xf]
    %v28 = vld [vmem:[%s2] sm:$0x1]
    %v30 = vlaneseq
    %v31 = vshrl.u32 %v30, 7
    %v32 = vsub.s32 0, %v31
    %v33 = vrot.slane %v28, %v32
    %v39 = vunpack.c.l.b16 %v16
    %v40 = vunpack.c.l.b16 %v17
    %v41 = vunpack.c.l.b16 %v18
    %v42 = vunpack.c.l.b16 %v19
    %v43 = vpack.c.b16 %v40, %v39
    %v44 = vpack.c.b16 %v42, %v41
    %v53 = vunpack.c.l.b16 %v20
    %v54 = vunpack.c.l.b16 %v21
    %v55 = vunpack.c.l.b16 %v22
    %v56 = vunpack.c.l.b16 %v23
    %v57 = vunpack.c.l.b16 %v24
    %v58 = vunpack.c.l.b16 %v25
    %v59 = vunpack.c.l.b16 %v26
    %v60 = vunpack.c.l.b16 %v27
    %v61 = vpack.c.b16 %v54, %v53
    %v62 = vpack.c.b16 %v56, %v55
    %v63 = vpack.c.b16 %v58, %v57
    %v64 = vpack.c.b16 %v60, %v59
    %vm69 = vcmask 523264
    %v71 = vsel %vm69, %v43, 0
    %v74 = vsel %vm69, %v44, 0
    %76 = vmatprep.subr.bf16.mxu0 0
    %77 = vmatpush1.bf16.msra.mxu0 0
    %78 = vmatprep.subr.bf16.mxu0 0
    %79 = vmatpush1.bf16.msra.mxu0 0
    %80 = vmatprep.subr.bf16.mxu0 0
    %81 = vmatpush1.bf16.msra.mxu0 0
    %82 = vmatprep.subr.bf16.mxu0 0
    %83 = vmatpush1.bf16.msra.mxu0 0
    %84 = vmatprep.subr.bf16.mxu0 0
    %85 = vmatpush1.bf16.msra.mxu0 %v64
    %86 = vmatprep.subr.bf16.mxu0 0
    %87 = vmatpush1.bf16.msra.mxu0 %v63
    %88 = vmatprep.subr.bf16.mxu0 0
    %89 = vmatpush1.bf16.msra.mxu0 %v62
    %90 = vmatprep.subr.bf16.mxu0 0
    %91 = vmatpush1.bf16.msra.mxu0 %v61
    %92 = vmatprep.subr.bf16.mxu0 0
    %93 = vmatpush2.bf16.msra.mxu0 0
    %94 = vmatprep.subr.bf16.mxu0 0
    %95 = vmatpush2.bf16.msra.mxu0 0
    %96 = vmatprep.subr.bf16.mxu0 0
    %97 = vmatpush2.bf16.msra.mxu0 0
    %98 = vmatprep.subr.bf16.mxu0 0
    %99 = vmatpush2.bf16.msra.mxu0 0
    %100 = vmatprep.subr.bf16.mxu0 0
    %101 = vmatpush2.bf16.msra.mxu0 0
    %102 = vmatprep.subr.bf16.mxu0 0
    %103 = vmatpush2.bf16.msra.mxu0 0
    %104 = vmatprep.subr.bf16.mxu0 0
    %105 = vmatpush2.bf16.msra.mxu0 0
    %106 = vmatprep.subr.bf16.mxu0 0
    %107 = vmatpush2.bf16.msra.mxu0 0
    %108 = vmatprep.mubr.bf16.mxu0 0
    %109 = vmatmul.mubr.bf16.gmra.mxu0 %v71
    %v110 = vpop.f32.mrf.mxu0
    %v111 = vadd.f32 %v33, %v110
    %v112 = vpop.f32.mrf.mxu0
    %v113 = vpop.f32.mrf.mxu0
    %v114 = vadd.f32 %v33, %v113
    %v115 = vpop.f32.mrf.mxu0
    %116 = vmatprep.mubr.bf16.mxu0 0
    %117 = vmatmul.mubr.bf16.gmra.mxu0 %v74
    %v118 = vpop.f32.mrf.mxu0
    %v119 = vadd.f32 %v33, %v118
    %v120 = vpop.f32.mrf.mxu0
    %v121 = vpop.f32.mrf.mxu0
    %v122 = vadd.f32 %v33, %v121
    %v123 = vpop.f32.mrf.mxu0
    %124 = vdwg.mxu0
    %vm125 = vcmask 261120
    %126 = vst.msk [vmem:[#allocation2] sm:$0xff] %vm125, %v111
    %127 = vst.msk [vmem:[#allocation2 + $0x8] sm:$0xff] %vm125, %v114
    %128 = vst.msk [vmem:[#allocation2 + $0x10] sm:$0xff] %vm125, %v119
    %129 = vst.msk [vmem:[#allocation2 + $0x18] sm:$0xff] %vm125, %v122
    // Predicated region
    $region14: #{patch_embed_2d.1} parent=1 // pred_check
      _
    $region15: #{patch_embed_2d.1} parent=1 // pred_check_branch
      %131 = sbr.rel (0) target = $region17
    $region16: #{patch_embed_2d.1} parent=1 // pred_region
      %s133 = ssub.s32 512, 512
      %134 = vsyncadd [#allocation3], %s133
      %s135 = sshll.u32 [#allocation2], 4
      %s136 = int_to_ptr.vmem [resolvable:$true] %s135
      %141 = dma.vmem_to_hbm [thread:$0]  %s136, 512, %s3, [#allocation3], 128, 128, 8
    $region17: #{patch_embed_2d.1} parent=1 // pred_fallthru
      _
    // Predicated region
    $region18: #{patch_embed_2d.1} parent=1 // pred_check
      _
    $region19: #{patch_embed_2d.1} parent=1 // pred_check_branch
      %143 = sbr.rel (0) target = $region21
    $region20: #{patch_embed_2d.1} parent=1 // pred_region
      %144 = dma.done [#allocation3], 512
    $region21: #{patch_embed_2d.1} parent=1 // pred_fallthru
      _
    %145 = vsyncpa [#allocation3], 1

</llo_original>
